<compile_context>
chip_gen: v5e
topology: v5e:2x2
jax: 0.10.0
libtpu: 0.0.40
codegen_flags: <defaults>
</compile_context>

<pallas_src>
import math

import jax
import jax.numpy as jnp
from jax.experimental import pallas as pl
from jax.experimental.pallas import tpu as pltpu

LANE = 128     # vreg lane width
SUBLANE = 8    # f32 sublane count


def _round_up(x, m):
    return ((x + m - 1) // m) * m


def _vmem_capacity_bytes():
    """Physical per-core VMEM (v5e/v6e: 128 MiB, v7x: 64 MiB); conservative fallback."""
    try:
        return int(pltpu.get_tpu_info().vmem_capacity_bytes)
    except Exception:
        return 64 << 20            # assume the smallest generation (v7x)


def _make_mlp_kernel(n_layers: int):
    """Kernel refs: (x, w0, b0, ..., w_n, b_n, out).

    n_layers hidden Linear+tanh layers, then one final Linear (identity).
    Matmuls accumulate in f32 on the MXU; bias add / tanh stay in f32.
    The compute-dtype cast happens in-kernel (h.astype(w.dtype))."""

    def kernel(*refs):
        x_ref = refs[0]
        out_ref = refs[-1]
        h = x_ref[...]
        for i in range(n_layers):
            w = refs[1 + 2 * i][...]
            b = refs[2 + 2 * i][...]          # (1, width) -> broadcasts over rows
            h = jnp.tanh(
                jnp.dot(h.astype(w.dtype), w, preferred_element_type=jnp.float32) + b
            )
        w = refs[1 + 2 * n_layers][...]
        b = refs[2 + 2 * n_layers][...]
        out_ref[...] = (
            jnp.dot(h.astype(w.dtype), w, preferred_element_type=jnp.float32) + b
        ).astype(out_ref.dtype)

    return kernel


def mlp_forward_pallas(obs, weights, biases, *, tile_b=None, single_buffer_params=True):
    """Run the whole MLP inside one Pallas kernel, gridded over the batch axis.

    obs:      [B, ob_dim]                 (real feature width, no lane padding)
    weights:  [in_i, out_i_pad]           (out widths multiples of 128; VMEM-resident)
    biases:   [1, out_i_pad] f32
    returns:  [B, out_pad] f32            (caller slices the lanes back to ac_dim)
    """
    n_layers = len(weights) - 1
    B, ob_dim = obs.shape
    out_pad = weights[-1].shape[1]

    vmem_cap = _vmem_capacity_bytes()
    vmem_budget = vmem_cap - (12 << 20)            # headroom for compiler scratch
    if tile_b is None:                             # generation-dependent default tile
        tile_b = 1024 if vmem_cap >= (96 << 20) else 512

    # Ensure grid >= 2 for medium/large batches so "parallel" shards across v7x's 2 TCs.
    if B > 2 * SUBLANE:
        tile_b = min(tile_b, _round_up(pl.cdiv(B, 2), SUBLANE))
    tile_b = _round_up(max(SUBLANE, min(tile_b, _round_up(B, SUBLANE))), SUBLANE)

    obs_itemsize = jnp.dtype(obs.dtype).itemsize
    param_bytes = sum(
        w.size * w.dtype.itemsize + b.size * b.dtype.itemsize
        for w, b in zip(weights, biases)
    )
    param_buf = 1 if single_buffer_params else 2
    max_width = max(w.shape[1] for w in weights)

    def _vmem_needed(tb):
        io = 2 * tb * (ob_dim * obs_itemsize + out_pad * 4)   # double-buffered obs/out
        act = 4 * tb * max_width * 4                          # live activations
        return io + param_buf * param_bytes + act + (2 << 20)

    while tile_b > SUBLANE and _vmem_needed(tile_b) > vmem_budget:
        tile_b = _round_up(max(SUBLANE, tile_b // 2), SUBLANE)
    if _vmem_needed(tile_b) > vmem_budget:
        # TODO(synk): fp8 weight quantization (v7x MXU) or K/N-tiled matmul fallback for
        # policies whose resident weights do not fit in v7x's 64 MiB VMEM.
        raise NotImplementedError("resident-weight MLP kernel does not fit in VMEM")

    grid = (pl.cdiv(B, tile_b),)   # partial last block is masked; rows are independent

    def _param_spec(shape):
        # Constant index_map -> parameters stay resident in VMEM across grid steps;
        # Buffered(1) avoids a useless second copy of every weight/bias.
        if single_buffer_params:
            return pl.BlockSpec(shape, lambda i: (0, 0), pipeline_mode=pl.Buffered(1))
        return pl.BlockSpec(shape, lambda i: (0, 0))

    args = [obs]
    in_specs = [pl.BlockSpec((tile_b, ob_dim), lambda i: (i, 0))]
    for w, b in zip(weights, biases):
        args += [w, b]
        in_specs += [_param_spec(w.shape), _param_spec(b.shape)]
    out_spec = pl.BlockSpec((tile_b, out_pad), lambda i: (i, 0))

    vmem_limit = int(min(max(_vmem_needed(tile_b), 32 << 20), vmem_budget))

    cost = pl.CostEstimate(
        flops=2 * B * sum(w.shape[0] * w.shape[1] for w in weights),
        transcendentals=B * sum(w.shape[1] for w in weights[:-1]),
        bytes_accessed=obs.size * obs_itemsize + param_bytes + B * out_pad * 4,
    )

    return pl.pallas_call(
        _make_mlp_kernel(n_layers),
        out_shape=jax.ShapeDtypeStruct((B, out_pad), jnp.float32),
        grid=grid,
        in_specs=in_specs,
        out_specs=out_spec,
        compiler_params=pltpu.CompilerParams(
            dimension_semantics=("parallel",),     # batch axis -> both TCs on v7x
            vmem_limit_bytes=vmem_limit,
        ),
        cost_estimate=cost,
    )(*args)


class PolicyPallas:
    """JAX/Pallas re-implementation of Policy.forward (inference only)."""

    def __init__(self, ob_dim, ac_dim, hidden_dim, n_layers, discrete, key,
                 compute_dtype=jnp.bfloat16, tile_b=None):
        self.ob_dim = ob_dim
        self.ac_dim = ac_dim
        self.hidden_dim = hidden_dim
        self.n_layers = n_layers
        self.discrete = discrete

        self.hid_pad = _round_up(hidden_dim, LANE)
        self.ac_pad = _round_up(ac_dim, LANE)

        dims = [ob_dim] + [hidden_dim] * n_layers + [ac_dim]
        # Layer-0 K stays at the real ob_dim (unpadded obs stream); hidden/output
        # widths are 128-padded so matmul outputs & stores are lane-dense.
        pdims = [ob_dim] + [self.hid_pad] * n_layers + [self.ac_pad]

        self.weights, self.biases = [], []          # exact f32 params (reference)
        self.weights_p, self.biases_p = [], []      # padded kernel operands
        for i in range(len(dims) - 1):
            key, wk, bk = jax.random.split(key, 3)
            bound = 1.0 / math.sqrt(dims[i])        # nn.Linear default init range
            w = jax.random.uniform(wk, (dims[i], dims[i + 1]), jnp.float32, -bound, bound)
            b = jax.random.uniform(bk, (dims[i + 1],), jnp.float32, -bound, bound)
            self.weights.append(w)
            self.biases.append(b)
            wp = jnp.zeros((pdims[i], pdims[i + 1]), jnp.float32)
            wp = wp.at[: dims[i], : dims[i + 1]].set(w)
            bp = jnp.zeros((1, pdims[i + 1]), jnp.float32)
            bp = bp.at[0, : dims[i + 1]].set(b)
            self.weights_p.append(wp.astype(compute_dtype))   # bf16 default (MXU path)
            self.biases_p.append(bp)                          # f32 (bias/tanh path)

        if not discrete:
            self.logstd = jnp.zeros((ac_dim,), jnp.float32)   # nn.Parameter(zeros)
            # Constant at inference -> precompute once (no per-forward dispatch).
            self.scale_tril = jnp.diag(jnp.exp(self.logstd))

        acd = self.ac_dim

        def _build_fwd(single_buffer):
            def _fwd(obs, weights_p, biases_p):
                out = mlp_forward_pallas(
                    obs, weights_p, biases_p,
                    tile_b=tile_b, single_buffer_params=single_buffer)
                return out[:, :acd]
            return jax.jit(_fwd)

        # Prefer single-buffered resident params; fall back if pipeline_mode=Buffered(1)
        # is not supported by the running jax/Mosaic build.
        self._fwd = _build_fwd(True)
        try:
            jax.block_until_ready(
                self._fwd(jnp.zeros((SUBLANE, ob_dim), jnp.float32),
                          self.weights_p, self.biases_p))
        except Exception:
            self._fwd = _build_fwd(False)

    def forward(self, obs):
        out = self._fwd(obs, self.weights_p, self.biases_p)
        if self.discrete:
            # TODO(synk): torch.distributions.Categorical (sampling / log_prob) has no
            # Pallas equivalent here; return the logits that parameterize it.
            return out
        # MultivariateNormal(mean, scale_tril=diag(exp(logstd)))
        return out, self.scale_tril

    def _reference_forward(self, obs):
        """Pure-JAX reference (unpadded f32) for correctness checking."""
        h = obs
        for w, b in zip(self.weights[:-1], self.biases[:-1]):
            h = jnp.tanh(h @ w + b)
        return h @ self.weights[-1] + self.biases[-1]


if __name__ == "__main__":
    key = jax.random.PRNGKey(0)
    key, ok1, ok2, pk_d, pk_c, pk_b = jax.random.split(key, 6)

    ob_dim, ac_dim, hidden_dim, n_layers = 16, 8, 32, 2

    # 1) discrete policy, small batch, f32 operands (tight tolerance)
    obs_small = jax.random.normal(ok1, (8, ob_dim), jnp.float32)
    pol_d = PolicyPallas(ob_dim, ac_dim, hidden_dim, n_layers, discrete=True,
                         key=pk_d, compute_dtype=jnp.float32)
    logits = jax.block_until_ready(pol_d.forward(obs_small))
    assert logits.shape == (8, ac_dim)
    assert jnp.allclose(logits, pol_d._reference_forward(obs_small), atol=1e-5, rtol=1e-5)

    # 2) continuous policy, batch not a tile multiple (exercises grid>1 + masked last block)
    obs_big = jax.random.normal(ok2, (200, ob_dim), jnp.float32)
    pol_c = PolicyPallas(ob_dim, ac_dim, hidden_dim, n_layers, discrete=False,
                         key=pk_c, compute_dtype=jnp.float32, tile_b=64)
    mean, scale_tril = pol_c.forward(obs_big)
    mean = jax.block_until_ready(mean)
    scale_tril = jax.block_until_ready(scale_tril)
    assert mean.shape == (200, ac_dim)
    assert scale_tril.shape == (ac_dim, ac_dim)
    assert jnp.allclose(mean, pol_c._reference_forward(obs_big), atol=1e-5, rtol=1e-5)
    assert jnp.allclose(scale_tril, jnp.eye(ac_dim), atol=1e-6)   # exp(0) = 1 diagonal

    # 3) default bf16 MXU operands with f32 accumulation (looser tolerance)
    pol_b = PolicyPallas(ob_dim, ac_dim, hidden_dim, n_layers, discrete=True, key=pk_b)
    logits_b = jax.block_until_ready(pol_b.forward(obs_small))
    assert jnp.allclose(logits_b, pol_b._reference_forward(obs_small), atol=5e-2, rtol=5e-2)

    print("KERNEL_OK")
</pallas_src>

<mosaic_0001>
module attributes {stable_mosaic.version = 11 : i64} {
  func.func @kernel(%arg0: i32, %arg1: memref<8x16xf32, #tpu.memory_space<vmem>>, %arg2: memref<16x128xf32, #tpu.memory_space<vmem>>, %arg3: memref<1x128xf32, #tpu.memory_space<vmem>>, %arg4: memref<128x128xf32, #tpu.memory_space<vmem>>, %arg5: memref<1x128xf32, #tpu.memory_space<vmem>>, %arg6: memref<128x128xf32, #tpu.memory_space<vmem>>, %arg7: memref<1x128xf32, #tpu.memory_space<vmem>>, %arg8: memref<8x128xf32, #tpu.memory_space<vmem>>) attributes {dimension_semantics = [#tpu.dimension_semantics<parallel>], iteration_bounds = array<i64: 1>, scalar_prefetch = 0 : i64, scratch_operands = 0 : i64, tpu.core_type = #tpu.core_type<tc>, window_params = [{transform_indices = @transform_0, window_bounds = array<i64: 8, 16>}, {pipeline_mode = #tpu.pipeline_mode<synchronous>, transform_indices = @transform_1, window_bounds = array<i64: 16, 128>}, {pipeline_mode = #tpu.pipeline_mode<synchronous>, transform_indices = @transform_2, window_bounds = array<i64: 1, 128>}, {pipeline_mode = #tpu.pipeline_mode<synchronous>, transform_indices = @transform_3, window_bounds = array<i64: 128, 128>}, {pipeline_mode = #tpu.pipeline_mode<synchronous>, transform_indices = @transform_4, window_bounds = array<i64: 1, 128>}, {pipeline_mode = #tpu.pipeline_mode<synchronous>, transform_indices = @transform_5, window_bounds = array<i64: 128, 128>}, {pipeline_mode = #tpu.pipeline_mode<synchronous>, transform_indices = @transform_6, window_bounds = array<i64: 1, 128>}, {transform_indices = @transform_7, window_bounds = array<i64: 8, 128>}]} {
    %c0 = arith.constant 0 : index
    %c0_0 = arith.constant 0 : index
    %0 = vector.load %arg1[%c0, %c0_0] : memref<8x16xf32, #tpu.memory_space<vmem>>, vector<8x16xf32>
    %c0_1 = arith.constant 0 : index
    %c0_2 = arith.constant 0 : index
    %1 = vector.load %arg2[%c0_1, %c0_2] : memref<16x128xf32, #tpu.memory_space<vmem>>, vector<16x128xf32>
    %c0_3 = arith.constant 0 : index
    %c0_4 = arith.constant 0 : index
    %2 = vector.load %arg3[%c0_3, %c0_4] : memref<1x128xf32, #tpu.memory_space<vmem>>, vector<1x128xf32>
    %cst = arith.constant dense<0.000000e+00> : vector<8x128xf32>
    %3 = tpu.matmul %0, %1, %cst {dimension_numbers = #tpu.dot_dimension_numbers<[1], [0], [0], [1], [0, 0, 1, 1], [], []>} : vector<8x16xf32>, vector<16x128xf32>, vector<8x128xf32> -> vector<8x128xf32>
    %4 = vector.broadcast %2 : vector<1x128xf32> to vector<8x128xf32>
    %5 = arith.addf %3, %4 : vector<8x128xf32>
    %6 = math.tanh %5 : vector<8x128xf32>
    %c0_5 = arith.constant 0 : index
    %c0_6 = arith.constant 0 : index
    %7 = vector.load %arg4[%c0_5, %c0_6] : memref<128x128xf32, #tpu.memory_space<vmem>>, vector<128x128xf32>
    %c0_7 = arith.constant 0 : index
    %c0_8 = arith.constant 0 : index
    %8 = vector.load %arg5[%c0_7, %c0_8] : memref<1x128xf32, #tpu.memory_space<vmem>>, vector<1x128xf32>
    %cst_9 = arith.constant dense<0.000000e+00> : vector<8x128xf32>
    %9 = tpu.matmul %6, %7, %cst_9 {dimension_numbers = #tpu.dot_dimension_numbers<[1], [0], [0], [1], [0, 0, 1, 1], [], []>} : vector<8x128xf32>, vector<128x128xf32>, vector<8x128xf32> -> vector<8x128xf32>
    %10 = vector.broadcast %8 : vector<1x128xf32> to vector<8x128xf32>
    %11 = arith.addf %9, %10 : vector<8x128xf32>
    %12 = math.tanh %11 : vector<8x128xf32>
    %c0_10 = arith.constant 0 : index
    %c0_11 = arith.constant 0 : index
    %13 = vector.load %arg6[%c0_10, %c0_11] : memref<128x128xf32, #tpu.memory_space<vmem>>, vector<128x128xf32>
    %c0_12 = arith.constant 0 : index
    %c0_13 = arith.constant 0 : index
    %14 = vector.load %arg7[%c0_12, %c0_13] : memref<1x128xf32, #tpu.memory_space<vmem>>, vector<1x128xf32>
    %cst_14 = arith.constant dense<0.000000e+00> : vector<8x128xf32>
    %15 = tpu.matmul %12, %13, %cst_14 {dimension_numbers = #tpu.dot_dimension_numbers<[1], [0], [0], [1], [0, 0, 1, 1], [], []>} : vector<8x128xf32>, vector<128x128xf32>, vector<8x128xf32> -> vector<8x128xf32>
    %16 = vector.broadcast %14 : vector<1x128xf32> to vector<8x128xf32>
    %17 = arith.addf %15, %16 : vector<8x128xf32>
    %c0_15 = arith.constant 0 : index
    %c0_16 = arith.constant 0 : index
    %18 = vector.load %arg8[%c0_15, %c0_16] : memref<8x128xf32, #tpu.memory_space<vmem>>, vector<8x128xf32>
    tpu.vector_store %arg8[%c0_15, %c0_16], %17 {strides = array<i32>} : memref<8x128xf32, #tpu.memory_space<vmem>>, vector<8x128xf32>,
    return
  }
  func.func @transform_0(%arg0: i32) -> (i32, i32) {
    %c0_i32 = arith.constant 0 : i32
    %c0_i32_0 = arith.constant 0 : i32
    return %arg0, %c0_i32 : i32, i32
  }
  func.func @transform_1(%arg0: i32) -> (i32, i32) {
    %c0_i32 = arith.constant 0 : i32
    %c0_i32_0 = arith.constant 0 : i32
    %c0_i32_1 = arith.constant 0 : i32
    return %c0_i32, %c0_i32_0 : i32, i32
  }
  func.func @transform_2(%arg0: i32) -> (i32, i32) {
    %c0_i32 = arith.constant 0 : i32
    %c0_i32_0 = arith.constant 0 : i32
    %c0_i32_1 = arith.constant 0 : i32
    return %c0_i32, %c0_i32_0 : i32, i32
  }
  func.func @transform_3(%arg0: i32) -> (i32, i32) {
    %c0_i32 = arith.constant 0 : i32
    %c0_i32_0 = arith.constant 0 : i32
    %c0_i32_1 = arith.constant 0 : i32
    return %c0_i32, %c0_i32_0 : i32, i32
  }
  func.func @transform_4(%arg0: i32) -> (i32, i32) {
    %c0_i32 = arith.constant 0 : i32
    %c0_i32_0 = arith.constant 0 : i32
    %c0_i32_1 = arith.constant 0 : i32
    return %c0_i32, %c0_i32_0 : i32, i32
  }
  func.func @transform_5(%arg0: i32) -> (i32, i32) {
    %c0_i32 = arith.constant 0 : i32
    %c0_i32_0 = arith.constant 0 : i32
    %c0_i32_1 = arith.constant 0 : i32
    return %c0_i32, %c0_i32_0 : i32, i32
  }
  func.func @transform_6(%arg0: i32) -> (i32, i32) {
    %c0_i32 = arith.constant 0 : i32
    %c0_i32_0 = arith.constant 0 : i32
    %c0_i32_1 = arith.constant 0 : i32
    return %c0_i32, %c0_i32_0 : i32, i32
  }
  func.func @transform_7(%arg0: i32) -> (i32, i32) {
    %c0_i32 = arith.constant 0 : i32
    %c0_i32_0 = arith.constant 0 : i32
    return %arg0, %c0_i32 : i32, i32
  }
}

module attributes {stable_mosaic.version = 11 : i64} {
  func.func @kernel(%arg0: i32, %arg1: memref<8x16xf32, #tpu.memory_space<vmem>>, %arg2: memref<16x128xf32, #tpu.memory_space<vmem>>, %arg3: memref<1x128xf32, #tpu.memory_space<vmem>>, %arg4: memref<128x128xf32, #tpu.memory_space<vmem>>, %arg5: memref<1x128xf32, #tpu.memory_space<vmem>>, %arg6: memref<128x128xf32, #tpu.memory_space<vmem>>, %arg7: memref<1x128xf32, #tpu.memory_space<vmem>>, %arg8: memref<8x128xf32, #tpu.memory_space<vmem>>) attributes {dimension_semantics = [#tpu.dimension_semantics<parallel>], iteration_bounds = array<i64: 1>, scalar_prefetch = 0 : i64, scratch_operands = 0 : i64, tpu.core_type = #tpu.core_type<tc>, window_params = [{transform_indices = @transform_0, window_bounds = array<i64: 8, 16>}, {pipeline_mode = #tpu.pipeline_mode<synchronous>, transform_indices = @transform_1, window_bounds = array<i64: 16, 128>}, {pipeline_mode = #tpu.pipeline_mode<synchronous>, transform_indices = @transform_2, window_bounds = array<i64: 1, 128>}, {pipeline_mode = #tpu.pipeline_mode<synchronous>, transform_indices = @transform_3, window_bounds = array<i64: 128, 128>}, {pipeline_mode = #tpu.pipeline_mode<synchronous>, transform_indices = @transform_4, window_bounds = array<i64: 1, 128>}, {pipeline_mode = #tpu.pipeline_mode<synchronous>, transform_indices = @transform_5, window_bounds = array<i64: 128, 128>}, {pipeline_mode = #tpu.pipeline_mode<synchronous>, transform_indices = @transform_6, window_bounds = array<i64: 1, 128>}, {transform_indices = @transform_7, window_bounds = array<i64: 8, 128>}]} {
    %c0 = arith.constant 0 : index
    %c0_0 = arith.constant 0 : index
    %0 = vector.load %arg1[%c0, %c0_0] : memref<8x16xf32, #tpu.memory_space<vmem>>, vector<8x16xf32>
    %c0_1 = arith.constant 0 : index
    %c0_2 = arith.constant 0 : index
    %1 = vector.load %arg2[%c0_1, %c0_2] : memref<16x128xf32, #tpu.memory_space<vmem>>, vector<16x128xf32>
    %c0_3 = arith.constant 0 : index
    %c0_4 = arith.constant 0 : index
    %2 = vector.load %arg3[%c0_3, %c0_4] : memref<1x128xf32, #tpu.memory_space<vmem>>, vector<1x128xf32>
    %cst = arith.constant dense<0.000000e+00> : vector<8x128xf32>
    %3 = tpu.matmul %0, %1, %cst {dimension_numbers = #tpu.dot_dimension_numbers<[1], [0], [0], [1], [0, 0, 1, 1], [], []>} : vector<8x16xf32>, vector<16x128xf32>, vector<8x128xf32> -> vector<8x128xf32>
    %4 = vector.broadcast %2 : vector<1x128xf32> to vector<8x128xf32>
    %5 = arith.addf %3, %4 : vector<8x128xf32>
    %6 = math.tanh %5 : vector<8x128xf32>
    %c0_5 = arith.constant 0 : index
    %c0_6 = arith.constant 0 : index
    %7 = vector.load %arg4[%c0_5, %c0_6] : memref<128x128xf32, #tpu.memory_space<vmem>>, vector<128x128xf32>
    %c0_7 = arith.constant 0 : index
    %c0_8 = arith.constant 0 : index
    %8 = vector.load %arg5[%c0_7, %c0_8] : memref<1x128xf32, #tpu.memory_space<vmem>>, vector<1x128xf32>
    %cst_9 = arith.constant dense<0.000000e+00> : vector<8x128xf32>
    %9 = tpu.matmul %6, %7, %cst_9 {dimension_numbers = #tpu.dot_dimension_numbers<[1], [0], [0], [1], [0, 0, 1, 1], [], []>} : vector<8x128xf32>, vector<128x128xf32>, vector<8x128xf32> -> vector<8x128xf32>
    %10 = vector.broadcast %8 : vector<1x128xf32> to vector<8x128xf32>
    %11 = arith.addf %9, %10 : vector<8x128xf32>
    %12 = math.tanh %11 : vector<8x128xf32>
    %c0_10 = arith.constant 0 : index
    %c0_11 = arith.constant 0 : index
    %13 = vector.load %arg6[%c0_10, %c0_11] : memref<128x128xf32, #tpu.memory_space<vmem>>, vector<128x128xf32>
    %c0_12 = arith.constant 0 : index
    %c0_13 = arith.constant 0 : index
    %14 = vector.load %arg7[%c0_12, %c0_13] : memref<1x128xf32, #tpu.memory_space<vmem>>, vector<1x128xf32>
    %cst_14 = arith.constant dense<0.000000e+00> : vector<8x128xf32>
    %15 = tpu.matmul %12, %13, %cst_14 {dimension_numbers = #tpu.dot_dimension_numbers<[1], [0], [0], [1], [0, 0, 1, 1], [], []>} : vector<8x128xf32>, vector<128x128xf32>, vector<8x128xf32> -> vector<8x128xf32>
    %16 = vector.broadcast %14 : vector<1x128xf32> to vector<8x128xf32>
    %17 = arith.addf %15, %16 : vector<8x128xf32>
    %c0_15 = arith.constant 0 : index
    %c0_16 = arith.constant 0 : index
    %18 = vector.load %arg8[%c0_15, %c0_16] : memref<8x128xf32, #tpu.memory_space<vmem>>, vector<8x128xf32>
    tpu.vector_store %arg8[%c0_15, %c0_16], %17 {strides = array<i32>} : memref<8x128xf32, #tpu.memory_space<vmem>>, vector<8x128xf32>,
    return
  }
  func.func @transform_0(%arg0: i32) -> (i32, i32) {
    %c0_i32 = arith.constant 0 : i32
    %c0_i32_0 = arith.constant 0 : i32
    return %arg0, %c0_i32 : i32, i32
  }
  func.func @transform_1(%arg0: i32) -> (i32, i32) {
    %c0_i32 = arith.constant 0 : i32
    %c0_i32_0 = arith.constant 0 : i32
    %c0_i32_1 = arith.constant 0 : i32
    return %c0_i32, %c0_i32_0 : i32, i32
  }
  func.func @transform_2(%arg0: i32) -> (i32, i32) {
    %c0_i32 = arith.constant 0 : i32
    %c0_i32_0 = arith.constant 0 : i32
    %c0_i32_1 = arith.constant 0 : i32
    return %c0_i32, %c0_i32_0 : i32, i32
  }
  func.func @transform_3(%arg0: i32) -> (i32, i32) {
    %c0_i32 = arith.constant 0 : i32
    %c0_i32_0 = arith.constant 0 : i32
    %c0_i32_1 = arith.constant 0 : i32
    return %c0_i32, %c0_i32_0 : i32, i32
  }
  func.func @transform_4(%arg0: i32) -> (i32, i32) {
    %c0_i32 = arith.constant 0 : i32
    %c0_i32_0 = arith.constant 0 : i32
    %c0_i32_1 = arith.constant 0 : i32
    return %c0_i32, %c0_i32_0 : i32, i32
  }
  func.func @transform_5(%arg0: i32) -> (i32, i32) {
    %c0_i32 = arith.constant 0 : i32
    %c0_i32_0 = arith.constant 0 : i32
    %c0_i32_1 = arith.constant 0 : i32
    return %c0_i32, %c0_i32_0 : i32, i32
  }
  func.func @transform_6(%arg0: i32) -> (i32, i32) {
    %c0_i32 = arith.constant 0 : i32
    %c0_i32_0 = arith.constant 0 : i32
    %c0_i32_1 = arith.constant 0 : i32
    return %c0_i32, %c0_i32_0 : i32, i32
  }
  func.func @transform_7(%arg0: i32) -> (i32, i32) {
    %c0_i32 = arith.constant 0 : i32
    %c0_i32_0 = arith.constant 0 : i32
    return %arg0, %c0_i32 : i32, i32
  }
}

</mosaic_0001>

<llo_original>
// kernel: _fwd.1
$region0: #{_fwd.1}
  #allocation0 [shape = 'u32[]', space=smem, size = 0x4, offset = 0x4, fixed_abs, tag = 'smem constant byte address 0x4 - core index']
  #allocation1 [shape = 'u32[72,128]{1,0:T(1,128)}', space=vmem, size = 0x9000, scoped, tag = 'internal scratch']
  %s0 = inlined_call_operand.hbm [shape: f32[8,16], index: 0, kind: input, shape index: {}]
  %s1 = inlined_call_operand.hbm [shape: f32[16,128], index: 1, kind: input, shape index: {}]
  %s2 = inlined_call_operand.vmem [shape: f32[1,128], index: 2, kind: input, shape index: {}]
  %s3 = inlined_call_operand.hbm [shape: f32[128,128], index: 3, kind: input, shape index: {}]
  %s4 = inlined_call_operand.vmem [shape: f32[1,128], index: 4, kind: input, shape index: {}]
  %s5 = inlined_call_operand.hbm [shape: f32[128,128], index: 5, kind: input, shape index: {}]
  %s6 = inlined_call_operand.vmem [shape: f32[1,128], index: 6, kind: input, shape index: {}]
  %s7 = inlined_call_operand.hbm [shape: f32[8,128], index: 7, kind: output, shape index: {}]
  %s8 = sld [smem:[#allocation0]]
  $region54: #{_fwd.1} parent=0
    _
  %s10 = ssub.s32 1, %s8
  %s11 = scalar_select 0, %s10, %s8
  $region1: #{_fwd.1} parent=0
    #allocation2 [shape = 'u8[4096]{0}', space=vmem, size = 0x1000, scoped, tag = 'input window, operand 0, single buffered']
    #allocation3 [shape = 's32[1]{0}', space=sflag, size = 0x4, scoped, tag = 'scoped memory for _fwd.1']
    #allocation4 [shape = 's32[1]{0}', space=sflag, size = 0x4, scoped, tag = 'scoped memory for _fwd.1']
    #allocation5 [shape = 'u8[8192]{0}', space=vmem, size = 0x2000, scoped, tag = 'input window, operand 1, single buffered']
    #allocation6 [shape = 's32[1]{0}', space=sflag, size = 0x4, scoped, tag = 'scoped memory for _fwd.1']
    #allocation7 [shape = 'u8[65536]{0}', space=vmem, size = 0x10000, scoped, tag = 'input window, operand 3, single buffered']
    #allocation8 [shape = 'u8[65536]{0}', space=vmem, size = 0x10000, scoped, tag = 'input window, operand 5, single buffered']
    #allocation9 [shape = 's32[1]{0}', space=sflag, size = 0x4, scoped, tag = 'scoped memory for _fwd.1']
    #allocation10 [shape = 'u8[4096]{0}', space=vmem, size = 0x1000, scoped, tag = 'output window, operand 0, single buffered']
    %12 = vsyncpa [#allocation3], 0
    %13 = vsyncpa [#allocation6], 0
    %14 = vsyncpa [#allocation9], 0
    %15 = vsyncpa [#allocation4], 0
    // Predicated region
    $region2: #{_fwd.1} parent=1 // pred_check
      _
    $region3: #{_fwd.1} parent=1 // pred_check_branch
      %17 = sbr.rel (0) target = $region5
    $region4: #{_fwd.1} parent=1 // pred_region
      %19 = vsyncadd [#allocation3], 0
      %s21 = sshll.u32 %s0, 4
      %s22 = int_to_ptr.hbm [resolvable:$true] %s21
      %s23 = sshll.u32 [#allocation2], 4
      %s24 = int_to_ptr.vmem [resolvable:$true] %s23
      %26 = dma.hbm_to_vmem [thread:$0]  %s22, 128, %s24, [#allocation3]
    $region5: #{_fwd.1} parent=1 // pred_fallthru
      _
    // Predicated region
    $region6: #{_fwd.1} parent=1 // pred_check
      _
    $region7: #{_fwd.1} parent=1 // pred_check_branch
      %28 = sbr.rel (0) target = $region9
    $region8: #{_fwd.1} parent=1 // pred_region
      %30 = vsyncadd [#allocation6], 0
      %s31 = sshll.u32 %s1, 4
      %s32 = int_to_ptr.hbm [resolvable:$true] %s31
      %s33 = sshll.u32 [#allocation5], 4
      %s34 = int_to_ptr.vmem [resolvable:$true] %s33
      %39 = dma.hbm_to_vmem [thread:$0]  %s32, 256, %s34, [#allocation6], 128, 128, 8
    $region9: #{_fwd.1} parent=1 // pred_fallthru
      _
    // Predicated region
    $region10: #{_fwd.1} parent=1 // pred_check
      _
    $region11: #{_fwd.1} parent=1 // pred_check_branch
      %41 = sbr.rel (0) target = $region13
    $region12: #{_fwd.1} parent=1 // pred_region
      _
    $region13: #{_fwd.1} parent=1 // pred_fallthru
      _
    // Predicated region
    $region14: #{_fwd.1} parent=1 // pred_check
      _
    $region15: #{_fwd.1} parent=1 // pred_check_branch
      %43 = sbr.rel (0) target = $region17
    $region16: #{_fwd.1} parent=1 // pred_region
      %45 = vsyncadd [#allocation6], 0
      %s46 = sshll.u32 %s3, 4
      %s47 = int_to_ptr.hbm [resolvable:$true] %s46
      %s48 = sshll.u32 [#allocation7], 4
      %s49 = int_to_ptr.vmem [resolvable:$true] %s48
      %54 = dma.hbm_to_vmem [thread:$0]  %s47, 2048, %s49, [#allocation6], 128, 128, 8
    $region17: #{_fwd.1} parent=1 // pred_fallthru
      _
    // Predicated region
    $region18: #{_fwd.1} parent=1 // pred_check
      _
    $region19: #{_fwd.1} parent=1 // pred_check_branch
      %56 = sbr.rel (0) target = $region21
    $region20: #{_fwd.1} parent=1 // pred_region
      _
    $region21: #{_fwd.1} parent=1 // pred_fallthru
      _
    // Predicated region
    $region22: #{_fwd.1} parent=1 // pred_check
      _
    $region23: #{_fwd.1} parent=1 // pred_check_branch
      %58 = sbr.rel (0) target = $region25
    $region24: #{_fwd.1} parent=1 // pred_region
      %60 = vsyncadd [#allocation9], 0
      %s61 = sshll.u32 %s5, 4
      %s62 = int_to_ptr.hbm [resolvable:$true] %s61
      %s63 = sshll.u32 [#allocation8], 4
      %s64 = int_to_ptr.vmem [resolvable:$true] %s63
      %69 = dma.hbm_to_vmem [thread:$0]  %s62, 2048, %s64, [#allocation9], 128, 128, 8
    $region25: #{_fwd.1} parent=1 // pred_fallthru
      _
    // Predicated region
    $region26: #{_fwd.1} parent=1 // pred_check
      _
    $region27: #{_fwd.1} parent=1 // pred_check_branch
      %71 = sbr.rel (0) target = $region29
    $region28: #{_fwd.1} parent=1 // pred_region
      _
    $region29: #{_fwd.1} parent=1 // pred_fallthru
      _
    // Predicated region
    $region30: #{_fwd.1} parent=1 // pred_check
      _
    $region31: #{_fwd.1} parent=1 // pred_check_branch
      %73 = sbr.rel (0) target = $region33
    $region32: #{_fwd.1} parent=1 // pred_region
      %75 = dma.done [#allocation3], 128
    $region33: #{_fwd.1} parent=1 // pred_fallthru
      _
    // Predicated region
    $region34: #{_fwd.1} parent=1 // pred_check
      _
    $region35: #{_fwd.1} parent=1 // pred_check_branch
      %77 = sbr.rel (0) target = $region37
    $region36: #{_fwd.1} parent=1 // pred_region
      %79 = dma.done [#allocation6], 256
    $region37: #{_fwd.1} parent=1 // pred_fallthru
      _
    // Predicated region
    $region38: #{_fwd.1} parent=1 // pred_check
      _
    $region39: #{_fwd.1} parent=1 // pred_check_branch
      %81 = sbr.rel (0) target = $region41
    $region40: #{_fwd.1} parent=1 // pred_region
      %83 = dma.done [#allocation6], 2048
    $region41: #{_fwd.1} parent=1 // pred_fallthru
      _
    // Predicated region
    $region42: #{_fwd.1} parent=1 // pred_check
      _
    $region43: #{_fwd.1} parent=1 // pred_check_branch
      %85 = sbr.rel (0) target = $region45
    $region44: #{_fwd.1} parent=1 // pred_region
      %87 = dma.done [#allocation9], 2048
    $region45: #{_fwd.1} parent=1 // pred_fallthru
      _
    %v88 = vld [vmem:[#allocation2] sm:$0xff]
    %v89 = vld [vmem:[#allocation5] sm:$0xff]
    %v90 = vld [vmem:[#allocation5 + $0x8] sm:$0xff]
    %v91 = vld [vmem:[%s2] sm:$0x1]
    %v93 = vperm.slane %v91, 0
    %vm95 = vcmask 130048
    %v97 = vsel %vm95, %v88, 0
    %99 = vmatpush.msra.mxu0 0.0
    %100 = vmatpush.msra.mxu0 0.0
    %101 = vmatpush.msra.mxu0 0.0
    %102 = vmatpush.msra.mxu0 0.0
    %103 = vmatpush.msra.mxu0 0.0
    %104 = vmatpush.msra.mxu0 0.0
    %105 = vmatpush.msra.mxu0 0.0
    %106 = vmatpush.msra.mxu0 0.0
    %107 = vmatpush.msra.mxu0 0.0
    %108 = vmatpush.msra.mxu0 0.0
    %109 = vmatpush.msra.mxu0 0.0
    %110 = vmatpush.msra.mxu0 0.0
    %111 = vmatpush.msra.mxu0 0.0
    %112 = vmatpush.msra.mxu0 0.0
    %113 = vmatpush.msra.mxu0 %v90
    %114 = vmatpush.msra.mxu0 %v89
    %115 = vmatmul.f32.gmra.mxu0 %v97
    %v116 = vpop.f32.mrf.mxu0
    %v117 = vadd.f32 %v93, %v116
    %118 = vdwg.mxu0
    %v119 = vtanh.pop %v117
    %v120 = vld [vmem:[#allocation7] sm:$0xff]
    %v121 = vld [vmem:[#allocation7 + $0x8] sm:$0xff]
    %v122 = vld [vmem:[#allocation7 + $0x10] sm:$0xff]
    %v123 = vld [vmem:[#allocation7 + $0x18] sm:$0xff]
    %v124 = vld [vmem:[#allocation7 + $0x20] sm:$0xff]
    %v125 = vld [vmem:[#allocation7 + $0x28] sm:$0xff]
    %v126 = vld [vmem:[#allocation7 + $0x30] sm:$0xff]
    %v127 = vld [vmem:[#allocation7 + $0x38] sm:$0xff]
    %v128 = vld [vmem:[#allocation7 + $0x40] sm:$0xff]
    %v129 = vld [vmem:[#allocation7 + $0x48] sm:$0xff]
    %v130 = vld [vmem:[#allocation7 + $0x50] sm:$0xff]
    %v131 = vld [vmem:[#allocation7 + $0x58] sm:$0xff]
    %v132 = vld [vmem:[#allocation7 + $0x60] sm:$0xff]
    %v133 = vld [vmem:[#allocation7 + $0x68] sm:$0xff]
    %v134 = vld [vmem:[#allocation7 + $0x70] sm:$0xff]
    %v135 = vld [vmem:[#allocation7 + $0x78] sm:$0xff]
    %v136 = vld [vmem:[%s4] sm:$0x1]
    %v138 = vperm.slane %v136, 0
    %140 = vmatpush.msra.mxu0 %v135
    %141 = vmatpush.msra.mxu0 %v134
    %142 = vmatpush.msra.mxu0 %v133
    %143 = vmatpush.msra.mxu0 %v132
    %144 = vmatpush.msra.mxu0 %v131
    %145 = vmatpush.msra.mxu0 %v130
    %146 = vmatpush.msra.mxu0 %v129
    %147 = vmatpush.msra.mxu0 %v128
    %148 = vmatpush.msra.mxu0 %v127
    %149 = vmatpush.msra.mxu0 %v126
    %150 = vmatpush.msra.mxu0 %v125
    %151 = vmatpush.msra.mxu0 %v124
    %152 = vmatpush.msra.mxu0 %v123
    %153 = vmatpush.msra.mxu0 %v122
    %154 = vmatpush.msra.mxu0 %v121
    %155 = vmatpush.msra.mxu0 %v120
    %156 = vmatmul.f32.gmra.mxu0 %v119
    %v157 = vpop.f32.mrf.mxu0
    %v158 = vadd.f32 %v138, %v157
    %159 = vdwg.mxu0
    %v160 = vtanh.pop %v158
    %v161 = vld [vmem:[#allocation8] sm:$0xff]
    %v162 = vld [vmem:[#allocation8 + $0x8] sm:$0xff]
    %v163 = vld [vmem:[#allocation8 + $0x10] sm:$0xff]
    %v164 = vld [vmem:[#allocation8 + $0x18] sm:$0xff]
    %v165 = vld [vmem:[#allocation8 + $0x20] sm:$0xff]
    %v166 = vld [vmem:[#allocation8 + $0x28] sm:$0xff]
    %v167 = vld [vmem:[#allocation8 + $0x30] sm:$0xff]
    %v168 = vld [vmem:[#allocation8 + $0x38] sm:$0xff]
    %v169 = vld [vmem:[#allocation8 + $0x40] sm:$0xff]
    %v170 = vld [vmem:[#allocation8 + $0x48] sm:$0xff]
    %v171 = vld [vmem:[#allocation8 + $0x50] sm:$0xff]
    %v172 = vld [vmem:[#allocation8 + $0x58] sm:$0xff]
    %v173 = vld [vmem:[#allocation8 + $0x60] sm:$0xff]
    %v174 = vld [vmem:[#allocation8 + $0x68] sm:$0xff]
    %v175 = vld [vmem:[#allocation8 + $0x70] sm:$0xff]
    %v176 = vld [vmem:[#allocation8 + $0x78] sm:$0xff]
    %v177 = vld [vmem:[%s6] sm:$0x1]
    %v179 = vperm.slane %v177, 0
    %181 = vmatpush.msra.mxu0 %v176
    %182 = vmatpush.msra.mxu0 %v175
    %183 = vmatpush.msra.mxu0 %v174
    %184 = vmatpush.msra.mxu0 %v173
    %185 = vmatpush.msra.mxu0 %v172
    %186 = vmatpush.msra.mxu0 %v171
    %187 = vmatpush.msra.mxu0 %v170
    %188 = vmatpush.msra.mxu0 %v169
    %189 = vmatpush.msra.mxu0 %v168
    %190 = vmatpush.msra.mxu0 %v167
    %191 = vmatpush.msra.mxu0 %v166
    %192 = vmatpush.msra.mxu0 %v165
    %193 = vmatpush.msra.mxu0 %v164
    %194 = vmatpush.msra.mxu0 %v163
    %195 = vmatpush.msra.mxu0 %v162
    %196 = vmatpush.msra.mxu0 %v161
    %197 = vmatmul.f32.gmra.mxu0 %v160
    %v198 = vpop.f32.mrf.mxu0
    %v199 = vadd.f32 %v179, %v198
    %200 = vdwg.mxu0
    %201 = vst [vmem:[#allocation10] sm:$0xff] %v199
    // Predicated region
    $region46: #{_fwd.1} parent=1 // pred_check
      _
    $region47: #{_fwd.1} parent=1 // pred_check_branch
      %203 = sbr.rel (0) target = $region49
    $region48: #{_fwd.1} parent=1 // pred_region
      %205 = vsyncadd [#allocation4], 0
      %s207 = sshll.u32 [#allocation10], 4
      %s208 = int_to_ptr.vmem [resolvable:$true] %s207
      %s209 = sshll.u32 %s7, 4
      %s210 = int_to_ptr.hbm [resolvable:$true] %s209
      %212 = dma.vmem_to_hbm [thread:$0]  %s208, 128, %s210, [#allocation4]
    $region49: #{_fwd.1} parent=1 // pred_fallthru
      _
    // Predicated region
    $region50: #{_fwd.1} parent=1 // pred_check
      _
    $region51: #{_fwd.1} parent=1 // pred_check_branch
      %214 = sbr.rel (0) target = $region53
    $region52: #{_fwd.1} parent=1 // pred_region
      %216 = dma.done [#allocation4], 128
    $region53: #{_fwd.1} parent=1 // pred_fallthru
      _
    %217 = vsyncpa [#allocation3], 1
    %218 = vsyncpa [#allocation6], 1
    %219 = vsyncpa [#allocation9], 1
    %220 = vsyncpa [#allocation4], 1

// kernel: _fwd.1
$region0: #{_fwd.1}
  #allocation0 [shape = 'u32[]', space=smem, size = 0x4, offset = 0x4, fixed_abs, tag = 'smem constant byte address 0x4 - core index']
  #allocation1 [shape = 'u32[72,128]{1,0:T(1,128)}', space=vmem, size = 0x9000, scoped, tag = 'internal scratch']
  %s0 = inlined_call_operand.hbm [shape: f32[8,16], index: 0, kind: input, shape index: {}]
  %s1 = inlined_call_operand.hbm [shape: f32[16,128], index: 1, kind: input, shape index: {}]
  %s2 = inlined_call_operand.vmem [shape: f32[1,128], index: 2, kind: input, shape index: {}]
  %s3 = inlined_call_operand.hbm [shape: f32[128,128], index: 3, kind: input, shape index: {}]
  %s4 = inlined_call_operand.vmem [shape: f32[1,128], index: 4, kind: input, shape index: {}]
  %s5 = inlined_call_operand.hbm [shape: f32[128,128], index: 5, kind: input, shape index: {}]
  %s6 = inlined_call_operand.vmem [shape: f32[1,128], index: 6, kind: input, shape index: {}]
  %s7 = inlined_call_operand.hbm [shape: f32[8,128], index: 7, kind: output, shape index: {}]
  %s8 = sld [smem:[#allocation0]]
  $region54: #{_fwd.1} parent=0
    _
  %s10 = ssub.s32 1, %s8
  %s11 = scalar_select 0, %s10, %s8
  $region1: #{_fwd.1} parent=0
    #allocation2 [shape = 'u8[4096]{0}', space=vmem, size = 0x1000, scoped, tag = 'input window, operand 0, single buffered']
    #allocation3 [shape = 's32[1]{0}', space=sflag, size = 0x4, scoped, tag = 'scoped memory for _fwd.1']
    #allocation4 [shape = 's32[1]{0}', space=sflag, size = 0x4, scoped, tag = 'scoped memory for _fwd.1']
    #allocation5 [shape = 'u8[8192]{0}', space=vmem, size = 0x2000, scoped, tag = 'input window, operand 1, single buffered']
    #allocation6 [shape = 's32[1]{0}', space=sflag, size = 0x4, scoped, tag = 'scoped memory for _fwd.1']
    #allocation7 [shape = 'u8[65536]{0}', space=vmem, size = 0x10000, scoped, tag = 'input window, operand 3, single buffered']
    #allocation8 [shape = 'u8[65536]{0}', space=vmem, size = 0x10000, scoped, tag = 'input window, operand 5, single buffered']
    #allocation9 [shape = 's32[1]{0}', space=sflag, size = 0x4, scoped, tag = 'scoped memory for _fwd.1']
    #allocation10 [shape = 'u8[4096]{0}', space=vmem, size = 0x1000, scoped, tag = 'output window, operand 0, single buffered']
    %12 = vsyncpa [#allocation3], 0
    %13 = vsyncpa [#allocation6], 0
    %14 = vsyncpa [#allocation9], 0
    %15 = vsyncpa [#allocation4], 0
    // Predicated region
    $region2: #{_fwd.1} parent=1 // pred_check
      _
    $region3: #{_fwd.1} parent=1 // pred_check_branch
      %17 = sbr.rel (0) target = $region5
    $region4: #{_fwd.1} parent=1 // pred_region
      %19 = vsyncadd [#allocation3], 0
      %s21 = sshll.u32 %s0, 4
      %s22 = int_to_ptr.hbm [resolvable:$true] %s21
      %s23 = sshll.u32 [#allocation2], 4
      %s24 = int_to_ptr.vmem [resolvable:$true] %s23
      %26 = dma.hbm_to_vmem [thread:$0]  %s22, 128, %s24, [#allocation3]
    $region5: #{_fwd.1} parent=1 // pred_fallthru
      _
    // Predicated region
    $region6: #{_fwd.1} parent=1 // pred_check
      _
    $region7: #{_fwd.1} parent=1 // pred_check_branch
      %28 = sbr.rel (0) target = $region9
    $region8: #{_fwd.1} parent=1 // pred_region
      %30 = vsyncadd [#allocation6], 0
      %s31 = sshll.u32 %s1, 4
      %s32 = int_to_ptr.hbm [resolvable:$true] %s31
      %s33 = sshll.u32 [#allocation5], 4
      %s34 = int_to_ptr.vmem [resolvable:$true] %s33
      %39 = dma.hbm_to_vmem [thread:$0]  %s32, 256, %s34, [#allocation6], 128, 128, 8
    $region9: #{_fwd.1} parent=1 // pred_fallthru
      _
    // Predicated region
    $region10: #{_fwd.1} parent=1 // pred_check
      _
    $region11: #{_fwd.1} parent=1 // pred_check_branch
      %41 = sbr.rel (0) target = $region13
    $region12: #{_fwd.1} parent=1 // pred_region
      _
    $region13: #{_fwd.1} parent=1 // pred_fallthru
      _
    // Predicated region
    $region14: #{_fwd.1} parent=1 // pred_check
      _
    $region15: #{_fwd.1} parent=1 // pred_check_branch
      %43 = sbr.rel (0) target = $region17
    $region16: #{_fwd.1} parent=1 // pred_region
      %45 = vsyncadd [#allocation6], 0
      %s46 = sshll.u32 %s3, 4
      %s47 = int_to_ptr.hbm [resolvable:$true] %s46
      %s48 = sshll.u32 [#allocation7], 4
      %s49 = int_to_ptr.vmem [resolvable:$true] %s48
      %54 = dma.hbm_to_vmem [thread:$0]  %s47, 2048, %s49, [#allocation6], 128, 128, 8
    $region17: #{_fwd.1} parent=1 // pred_fallthru
      _
    // Predicated region
    $region18: #{_fwd.1} parent=1 // pred_check
      _
    $region19: #{_fwd.1} parent=1 // pred_check_branch
      %56 = sbr.rel (0) target = $region21
    $region20: #{_fwd.1} parent=1 // pred_region
      _
    $region21: #{_fwd.1} parent=1 // pred_fallthru
      _
    // Predicated region
    $region22: #{_fwd.1} parent=1 // pred_check
      _
    $region23: #{_fwd.1} parent=1 // pred_check_branch
      %58 = sbr.rel (0) target = $region25
    $region24: #{_fwd.1} parent=1 // pred_region
      %60 = vsyncadd [#allocation9], 0
      %s61 = sshll.u32 %s5, 4
      %s62 = int_to_ptr.hbm [resolvable:$true] %s61
      %s63 = sshll.u32 [#allocation8], 4
      %s64 = int_to_ptr.vmem [resolvable:$true] %s63
      %69 = dma.hbm_to_vmem [thread:$0]  %s62, 2048, %s64, [#allocation9], 128, 128, 8
    $region25: #{_fwd.1} parent=1 // pred_fallthru
      _
    // Predicated region
    $region26: #{_fwd.1} parent=1 // pred_check
      _
    $region27: #{_fwd.1} parent=1 // pred_check_branch
      %71 = sbr.rel (0) target = $region29
    $region28: #{_fwd.1} parent=1 // pred_region
      _
    $region29: #{_fwd.1} parent=1 // pred_fallthru
      _
    // Predicated region
    $region30: #{_fwd.1} parent=1 // pred_check
      _
    $region31: #{_fwd.1} parent=1 // pred_check_branch
      %73 = sbr.rel (0) target = $region33
    $region32: #{_fwd.1} parent=1 // pred_region
      %75 = dma.done [#allocation3], 128
    $region33: #{_fwd.1} parent=1 // pred_fallthru
      _
    // Predicated region
    $region34: #{_fwd.1} parent=1 // pred_check
      _
    $region35: #{_fwd.1} parent=1 // pred_check_branch
      %77 = sbr.rel (0) target = $region37
    $region36: #{_fwd.1} parent=1 // pred_region
      %79 = dma.done [#allocation6], 256
    $region37: #{_fwd.1} parent=1 // pred_fallthru
      _
    // Predicated region
    $region38: #{_fwd.1} parent=1 // pred_check
      _
    $region39: #{_fwd.1} parent=1 // pred_check_branch
      %81 = sbr.rel (0) target = $region41
    $region40: #{_fwd.1} parent=1 // pred_region
      %83 = dma.done [#allocation6], 2048
    $region41: #{_fwd.1} parent=1 // pred_fallthru
      _
    // Predicated region
    $region42: #{_fwd.1} parent=1 // pred_check
      _
    $region43: #{_fwd.1} parent=1 // pred_check_branch
      %85 = sbr.rel (0) target = $region45
    $region44: #{_fwd.1} parent=1 // pred_region
      %87 = dma.done [#allocation9], 2048
    $region45: #{_fwd.1} parent=1 // pred_fallthru
      _
    %v88 = vld [vmem:[#allocation2] sm:$0xff]
    %v89 = vld [vmem:[#allocation5] sm:$0xff]
    %v90 = vld [vmem:[#allocation5 + $0x8] sm:$0xff]
    %v91 = vld [vmem:[%s2] sm:$0x1]
    %v93 = vperm.slane %v91, 0
    %vm95 = vcmask 130048
    %v97 = vsel %vm95, %v88, 0
    %99 = vmatpush.msra.mxu0 0.0
    %100 = vmatpush.msra.mxu0 0.0
    %101 = vmatpush.msra.mxu0 0.0
    %102 = vmatpush.msra.mxu0 0.0
    %103 = vmatpush.msra.mxu0 0.0
    %104 = vmatpush.msra.mxu0 0.0
    %105 = vmatpush.msra.mxu0 0.0
    %106 = vmatpush.msra.mxu0 0.0
    %107 = vmatpush.msra.mxu0 0.0
    %108 = vmatpush.msra.mxu0 0.0
    %109 = vmatpush.msra.mxu0 0.0
    %110 = vmatpush.msra.mxu0 0.0
    %111 = vmatpush.msra.mxu0 0.0
    %112 = vmatpush.msra.mxu0 0.0
    %113 = vmatpush.msra.mxu0 %v90
    %114 = vmatpush.msra.mxu0 %v89
    %115 = vmatmul.f32.gmra.mxu0 %v97
    %v116 = vpop.f32.mrf.mxu0
    %v117 = vadd.f32 %v93, %v116
    %118 = vdwg.mxu0
    %v119 = vtanh.pop %v117
    %v120 = vld [vmem:[#allocation7] sm:$0xff]
    %v121 = vld [vmem:[#allocation7 + $0x8] sm:$0xff]
    %v122 = vld [vmem:[#allocation7 + $0x10] sm:$0xff]
    %v123 = vld [vmem:[#allocation7 + $0x18] sm:$0xff]
    %v124 = vld [vmem:[#allocation7 + $0x20] sm:$0xff]
    %v125 = vld [vmem:[#allocation7 + $0x28] sm:$0xff]
    %v126 = vld [vmem:[#allocation7 + $0x30] sm:$0xff]
    %v127 = vld [vmem:[#allocation7 + $0x38] sm:$0xff]
    %v128 = vld [vmem:[#allocation7 + $0x40] sm:$0xff]
    %v129 = vld [vmem:[#allocation7 + $0x48] sm:$0xff]
    %v130 = vld [vmem:[#allocation7 + $0x50] sm:$0xff]
    %v131 = vld [vmem:[#allocation7 + $0x58] sm:$0xff]
    %v132 = vld [vmem:[#allocation7 + $0x60] sm:$0xff]
    %v133 = vld [vmem:[#allocation7 + $0x68] sm:$0xff]
    %v134 = vld [vmem:[#allocation7 + $0x70] sm:$0xff]
    %v135 = vld [vmem:[#allocation7 + $0x78] sm:$0xff]
    %v136 = vld [vmem:[%s4] sm:$0x1]
    %v138 = vperm.slane %v136, 0
    %140 = vmatpush.msra.mxu0 %v135
    %141 = vmatpush.msra.mxu0 %v134
    %142 = vmatpush.msra.mxu0 %v133
    %143 = vmatpush.msra.mxu0 %v132
    %144 = vmatpush.msra.mxu0 %v131
    %145 = vmatpush.msra.mxu0 %v130
    %146 = vmatpush.msra.mxu0 %v129
    %147 = vmatpush.msra.mxu0 %v128
    %148 = vmatpush.msra.mxu0 %v127
    %149 = vmatpush.msra.mxu0 %v126
    %150 = vmatpush.msra.mxu0 %v125
    %151 = vmatpush.msra.mxu0 %v124
    %152 = vmatpush.msra.mxu0 %v123
    %153 = vmatpush.msra.mxu0 %v122
    %154 = vmatpush.msra.mxu0 %v121
    %155 = vmatpush.msra.mxu0 %v120
    %156 = vmatmul.f32.gmra.mxu0 %v119
    %v157 = vpop.f32.mrf.mxu0
    %v158 = vadd.f32 %v138, %v157
    %159 = vdwg.mxu0
    %v160 = vtanh.pop %v158
    %v161 = vld [vmem:[#allocation8] sm:$0xff]
    %v162 = vld [vmem:[#allocation8 + $0x8] sm:$0xff]
    %v163 = vld [vmem:[#allocation8 + $0x10] sm:$0xff]
    %v164 = vld [vmem:[#allocation8 + $0x18] sm:$0xff]
    %v165 = vld [vmem:[#allocation8 + $0x20] sm:$0xff]
    %v166 = vld [vmem:[#allocation8 + $0x28] sm:$0xff]
    %v167 = vld [vmem:[#allocation8 + $0x30] sm:$0xff]
    %v168 = vld [vmem:[#allocation8 + $0x38] sm:$0xff]
    %v169 = vld [vmem:[#allocation8 + $0x40] sm:$0xff]
    %v170 = vld [vmem:[#allocation8 + $0x48] sm:$0xff]
    %v171 = vld [vmem:[#allocation8 + $0x50] sm:$0xff]
    %v172 = vld [vmem:[#allocation8 + $0x58] sm:$0xff]
    %v173 = vld [vmem:[#allocation8 + $0x60] sm:$0xff]
    %v174 = vld [vmem:[#allocation8 + $0x68] sm:$0xff]
    %v175 = vld [vmem:[#allocation8 + $0x70] sm:$0xff]
    %v176 = vld [vmem:[#allocation8 + $0x78] sm:$0xff]
    %v177 = vld [vmem:[%s6] sm:$0x1]
    %v179 = vperm.slane %v177, 0
    %181 = vmatpush.msra.mxu0 %v176
    %182 = vmatpush.msra.mxu0 %v175
    %183 = vmatpush.msra.mxu0 %v174
    %184 = vmatpush.msra.mxu0 %v173
    %185 = vmatpush.msra.mxu0 %v172
    %186 = vmatpush.msra.mxu0 %v171
    %187 = vmatpush.msra.mxu0 %v170
    %188 = vmatpush.msra.mxu0 %v169
    %189 = vmatpush.msra.mxu0 %v168
    %190 = vmatpush.msra.mxu0 %v167
    %191 = vmatpush.msra.mxu0 %v166
    %192 = vmatpush.msra.mxu0 %v165
    %193 = vmatpush.msra.mxu0 %v164
    %194 = vmatpush.msra.mxu0 %v163
    %195 = vmatpush.msra.mxu0 %v162
    %196 = vmatpush.msra.mxu0 %v161
    %197 = vmatmul.f32.gmra.mxu0 %v160
    %v198 = vpop.f32.mrf.mxu0
    %v199 = vadd.f32 %v179, %v198
    %200 = vdwg.mxu0
    %201 = vst [vmem:[#allocation10] sm:$0xff] %v199
    // Predicated region
    $region46: #{_fwd.1} parent=1 // pred_check
      _
    $region47: #{_fwd.1} parent=1 // pred_check_branch
      %203 = sbr.rel (0) target = $region49
    $region48: #{_fwd.1} parent=1 // pred_region
      %205 = vsyncadd [#allocation4], 0
      %s207 = sshll.u32 [#allocation10], 4
      %s208 = int_to_ptr.vmem [resolvable:$true] %s207
      %s209 = sshll.u32 %s7, 4
      %s210 = int_to_ptr.hbm [resolvable:$true] %s209
      %212 = dma.vmem_to_hbm [thread:$0]  %s208, 128, %s210, [#allocation4]
    $region49: #{_fwd.1} parent=1 // pred_fallthru
      _
    // Predicated region
    $region50: #{_fwd.1} parent=1 // pred_check
      _
    $region51: #{_fwd.1} parent=1 // pred_check_branch
      %214 = sbr.rel (0) target = $region53
    $region52: #{_fwd.1} parent=1 // pred_region
      %216 = dma.done [#allocation4], 128
    $region53: #{_fwd.1} parent=1 // pred_fallthru
      _
    %217 = vsyncpa [#allocation3], 1
    %218 = vsyncpa [#allocation6], 1
    %219 = vsyncpa [#allocation9], 1
    %220 = vsyncpa [#allocation4], 1

</llo_original>
